<compile_context>
chip_gen: v7x
topology: tpu7x:2x2x1
jax: 0.10.0
libtpu: 0.0.40
codegen_flags: <defaults>
</compile_context>

<pallas_src>
import jax
import jax.numpy as jnp
from jax.experimental import pallas as pl
from jax.experimental.pallas import tpu as pltpu


def _fused_kernel(cols_ref, mats_ref, o_ref):
    """Fused v5 for a block of independent instances.

    cols_ref : (bb, K, 2)   x1 (col 0) and x3 (col 1) stored as COLUMNS
    mats_ref : (bb, 3, K, K) x2, x4, x5
    o_ref    : (bb, K, K)
    """
    cols = cols_ref[...]
    mats = mats_ref[...]
    x1c = cols[:, :, 0:1]            # (bb, K, 1)
    x3c = cols[:, :, 1:2]            # (bb, K, 1)
    x2 = mats[:, 0]                  # (bb, K, K)
    x4 = mats[:, 1]                  # (bb, K, K)
    x5 = mats[:, 2]                  # (bb, K, K)

    # Two independent batched MXU pushes (no result dependency between them).
    s = jnp.einsum('bij,bjk->bik', x5, x4,
                   preferred_element_type=jnp.float32)          # x5 @ x4
    m = jnp.einsum('bij,bjk->bik', x2, x5,
                   preferred_element_type=jnp.float32)          # x2 @ x5

    # M=1 products on VPU + sublane reduce (XLU) instead of the MXU:
    #   r1 = x1 @ (x2 + x5@x4)  ==  x1@x2 + (x1@x5)@x4   (reassociated)
    #   r2 = x3 @ x4
    r1 = jnp.sum(x1c * (x2 + s), axis=-2, keepdims=True)        # (bb, 1, K)
    r2 = jnp.sum(x3c * x4, axis=-2, keepdims=True)              # (bb, 1, K)

    # v5 = (v1 + v2) + v4 : the (1,K) rows broadcast over the (K,K) term.
    o_ref[...] = (m + r1 + r2).astype(o_ref.dtype)


def model_forward_batched(x1, x2, x3, x4, x5, *, block_b=None):
    """B independent problem instances fused into one pallas_call."""
    b, _, k = x1.shape
    assert x1.shape == (b, 1, k) and x3.shape == (b, 1, k), (x1.shape, x3.shape)
    assert x2.shape == (b, k, k) and x4.shape == (b, k, k) and x5.shape == (b, k, k), (
        x2.shape, x4.shape, x5.shape)

    # Pack 5 inputs into 2 arrays -> 2 input DMAs / 4 pipeline buffers.
    cols = jnp.stack([x1[:, 0, :], x3[:, 0, :]], axis=-1)       # (B, K, 2)
    mats = jnp.stack([x2, x4, x5], axis=1)                      # (B, 3, K, K)

    if block_b is None:
        # Single grid step whenever possible (per-step overhead ~0.35 us);
        # cap the in-kernel unroll for very large batches.
        if b <= 128:
            block_b = b
        else:
            block_b = max(d for d in range(1, 129) if b % d == 0)
    assert b % block_b == 0
    nb = b // block_b

    flops = b * (4 * k ** 3 + 4 * k ** 2)
    bytes_accessed = 4 * (b * k * 2 + b * 3 * k * k + b * k * k)

    return pl.pallas_call(
        _fused_kernel,
        out_shape=jax.ShapeDtypeStruct((b, k, k), jnp.float32),
        grid=(nb,),
        in_specs=[
            pl.BlockSpec((block_b, k, 2), lambda i: (i, 0, 0)),
            pl.BlockSpec((block_b, 3, k, k), lambda i: (i, 0, 0, 0)),
        ],
        out_specs=pl.BlockSpec((block_b, k, k), lambda i: (i, 0, 0)),
        compiler_params=pltpu.CompilerParams(
            dimension_semantics=("parallel",)),
        cost_estimate=pl.CostEstimate(
            flops=flops, transcendentals=0, bytes_accessed=bytes_accessed),
    )(cols, mats)


def model_forward(x1, x2, x3, x4, x5):
    """Single-instance forward, identical semantics to the torch module."""
    k = x2.shape[0]
    assert x1.shape == (1, k) and x3.shape == (1, k), (x1.shape, x3.shape)
    assert x2.shape == (k, k) and x4.shape == (k, k) and x5.shape == (k, k), (
        x2.shape, x4.shape, x5.shape)
    out = model_forward_batched(x1[None], x2[None], x3[None], x4[None], x5[None])
    return out[0]


def model_reference(x1, x2, x3, x4, x5):
    v1 = x1 @ x2
    v2 = x3 @ x4
    v3 = v1 + v2
    v4 = (x1 @ x5) @ x4 + x2 @ x5
    return v3 + v4


if __name__ == "__main__":
    K = 8
    key = jax.random.PRNGKey(0)
    k1, k2, k3, k4, k5, kb = jax.random.split(key, 6)
    x1 = jax.random.normal(k1, (1, K), dtype=jnp.float32)
    x2 = jax.random.normal(k2, (K, K), dtype=jnp.float32)
    x3 = jax.random.normal(k3, (1, K), dtype=jnp.float32)
    x4 = jax.random.normal(k4, (K, K), dtype=jnp.float32)
    x5 = jax.random.normal(k5, (K, K), dtype=jnp.float32)

    # Single instance (module semantics).
    out = model_forward(x1, x2, x3, x4, x5)
    jax.block_until_ready(out)
    ref = model_reference(x1, x2, x3, x4, x5)
    assert out.shape == ref.shape, (out.shape, ref.shape)
    assert jnp.allclose(out, ref, atol=1e-4, rtol=1e-4), "single-instance mismatch"

    # Batched: B instances fused into ONE pallas_call, ONE grid step.
    B = 16
    kb1, kb2, kb3, kb4, kb5 = jax.random.split(kb, 5)
    x1b = jax.random.normal(kb1, (B, 1, K), dtype=jnp.float32)
    x2b = jax.random.normal(kb2, (B, K, K), dtype=jnp.float32)
    x3b = jax.random.normal(kb3, (B, 1, K), dtype=jnp.float32)
    x4b = jax.random.normal(kb4, (B, K, K), dtype=jnp.float32)
    x5b = jax.random.normal(kb5, (B, K, K), dtype=jnp.float32)

    outb = model_forward_batched(x1b, x2b, x3b, x4b, x5b)
    jax.block_until_ready(outb)
    refb = jax.vmap(model_reference)(x1b, x2b, x3b, x4b, x5b)
    assert outb.shape == refb.shape, (outb.shape, refb.shape)
    assert jnp.allclose(outb, refb, atol=1e-4, rtol=1e-4), "batched mismatch"

    print("KERNEL_OK")
</pallas_src>

<mosaic_0001>
module attributes {stable_mosaic.version = 11 : i64} {
  func.func @_fused_kernel(%arg0: i32, %arg1: memref<1x8x2xf32, #tpu.memory_space<vmem>>, %arg2: memref<1x3x8x8xf32, #tpu.memory_space<vmem>>, %arg3: memref<1x8x8xf32, #tpu.memory_space<vmem>>) attributes {dimension_semantics = [#tpu.dimension_semantics<parallel>], iteration_bounds = array<i64: 1>, scalar_prefetch = 0 : i64, scratch_operands = 0 : i64, tpu.core_type = #tpu.core_type<tc>, window_params = [{transform_indices = @transform_0, window_bounds = array<i64: 1, 8, 2>}, {transform_indices = @transform_1, window_bounds = array<i64: 1, 3, 8, 8>}, {transform_indices = @transform_2, window_bounds = array<i64: 1, 8, 8>}]} {
    %c0 = arith.constant 0 : index
    %c0_0 = arith.constant 0 : index
    %c0_1 = arith.constant 0 : index
    %0 = vector.load %arg1[%c0, %c0_0, %c0_1] : memref<1x8x2xf32, #tpu.memory_space<vmem>>, vector<1x8x2xf32>
    %c0_2 = arith.constant 0 : index
    %c0_3 = arith.constant 0 : index
    %c0_4 = arith.constant 0 : index
    %c0_5 = arith.constant 0 : index
    %1 = vector.load %arg2[%c0_2, %c0_3, %c0_4, %c0_5] : memref<1x3x8x8xf32, #tpu.memory_space<vmem>>, vector<1x3x8x8xf32>
    %2 = vector.extract_strided_slice %0 {offsets = [0, 0, 0], sizes = [1, 8, 1], strides = [1, 1, 1]} : vector<1x8x2xf32> to vector<1x8x1xf32>
    %3 = vector.extract_strided_slice %0 {offsets = [0, 0, 1], sizes = [1, 8, 1], strides = [1, 1, 1]} : vector<1x8x2xf32> to vector<1x8x1xf32>
    %4 = vector.extract_strided_slice %1 {offsets = [0, 0, 0, 0], sizes = [1, 1, 8, 8], strides = [1, 1, 1, 1]} : vector<1x3x8x8xf32> to vector<1x1x8x8xf32>
    %5 = vector.shape_cast %4 : vector<1x1x8x8xf32> to vector<1x8x8xf32>
    %6 = vector.extract_strided_slice %1 {offsets = [0, 1, 0, 0], sizes = [1, 1, 8, 8], strides = [1, 1, 1, 1]} : vector<1x3x8x8xf32> to vector<1x1x8x8xf32>
    %7 = vector.shape_cast %6 : vector<1x1x8x8xf32> to vector<1x8x8xf32>
    %8 = vector.extract_strided_slice %1 {offsets = [0, 2, 0, 0], sizes = [1, 1, 8, 8], strides = [1, 1, 1, 1]} : vector<1x3x8x8xf32> to vector<1x1x8x8xf32>
    %9 = vector.shape_cast %8 : vector<1x1x8x8xf32> to vector<1x8x8xf32>
    "tpu.trace_start"() <{level = 10 : i32, message = "bij,bjk->bik"}> : () -> ()
    %cst = arith.constant dense<0.000000e+00> : vector<1x8x8xf32>
    %10 = tpu.matmul %9, %7, %cst {dimension_numbers = #tpu.dot_dimension_numbers<[2], [1], [1], [2], [0, 0, 0, 1, 1, 2], [0], [0]>} : vector<1x8x8xf32>, vector<1x8x8xf32>, vector<1x8x8xf32> -> vector<1x8x8xf32>
    %cst_6 = arith.constant dense<0.000000e+00> : vector<1x8x8xf32>
    %11 = tpu.matmul %5, %9, %cst_6 {dimension_numbers = #tpu.dot_dimension_numbers<[2], [1], [1], [2], [0, 0, 0, 1, 1, 2], [0], [0]>} : vector<1x8x8xf32>, vector<1x8x8xf32>, vector<1x8x8xf32> -> vector<1x8x8xf32>
    "tpu.trace_stop"() : () -> ()
    %12 = arith.addf %5, %10 : vector<1x8x8xf32>
    %13 = vector.broadcast %2 : vector<1x8x1xf32> to vector<1x8x8xf32>
    %14 = arith.mulf %13, %12 : vector<1x8x8xf32>
    %cst_7 = arith.constant dense<0.000000e+00> : vector<1x8xf32>
    %15 = vector.multi_reduction <add>, %14, %cst_7 [1] : vector<1x8x8xf32> to vector<1x8xf32>
    %16 = vector.shape_cast %15 : vector<1x8xf32> to vector<1x1x8xf32>
    %17 = vector.broadcast %3 : vector<1x8x1xf32> to vector<1x8x8xf32>
    %18 = arith.mulf %17, %7 : vector<1x8x8xf32>
    %cst_8 = arith.constant dense<0.000000e+00> : vector<1x8xf32>
    %19 = vector.multi_reduction <add>, %18, %cst_8 [1] : vector<1x8x8xf32> to vector<1x8xf32>
    %20 = vector.shape_cast %19 : vector<1x8xf32> to vector<1x1x8xf32>
    %21 = vector.broadcast %16 : vector<1x1x8xf32> to vector<1x8x8xf32>
    %22 = arith.addf %11, %21 : vector<1x8x8xf32>
    %23 = vector.broadcast %20 : vector<1x1x8xf32> to vector<1x8x8xf32>
    %24 = arith.addf %22, %23 : vector<1x8x8xf32>
    %c0_9 = arith.constant 0 : index
    %c0_10 = arith.constant 0 : index
    %c0_11 = arith.constant 0 : index
    %25 = vector.load %arg3[%c0_9, %c0_10, %c0_11] : memref<1x8x8xf32, #tpu.memory_space<vmem>>, vector<1x8x8xf32>
    tpu.vector_store %arg3[%c0_9, %c0_10, %c0_11], %24 {strides = array<i32>} : memref<1x8x8xf32, #tpu.memory_space<vmem>>, vector<1x8x8xf32>,
    return
  }
  func.func @transform_0(%arg0: i32) -> (i32, i32, i32) {
    %c0_i32 = arith.constant 0 : i32
    %c0_i32_0 = arith.constant 0 : i32
    %c0_i32_1 = arith.constant 0 : i32
    return %arg0, %c0_i32, %c0_i32_0 : i32, i32, i32
  }
  func.func @transform_1(%arg0: i32) -> (i32, i32, i32, i32) {
    %c0_i32 = arith.constant 0 : i32
    %c0_i32_0 = arith.constant 0 : i32
    %c0_i32_1 = arith.constant 0 : i32
    %c0_i32_2 = arith.constant 0 : i32
    return %arg0, %c0_i32, %c0_i32_0, %c0_i32_1 : i32, i32, i32, i32
  }
  func.func @transform_2(%arg0: i32) -> (i32, i32, i32) {
    %c0_i32 = arith.constant 0 : i32
    %c0_i32_0 = arith.constant 0 : i32
    %c0_i32_1 = arith.constant 0 : i32
    return %arg0, %c0_i32, %c0_i32_0 : i32, i32, i32
  }
}

</mosaic_0001>

<llo_original>
// kernel: tpu_custom_call.1
$region0: #{tpu_custom_call.1}
  #allocation0 [shape = 'u32[]', space=smem, size = 0x4, offset = 0x4, fixed_abs, tag = 'smem constant byte address 0x4 - core index']
  #allocation1 [shape = 'u32[144,128]{1,0:T(1,128)}', space=vmem, size = 0x12000, scoped, tag = 'internal scratch']
  %s0 = inlined_call_operand.vmem [shape: f32[1,8,2], index: 0, kind: input, shape index: {}]
  %s1 = inlined_call_operand.hbm [shape: f32[1,3,8,8], index: 1, kind: input, shape index: {}]
  %s2 = inlined_call_operand.hbm [shape: f32[1,8,8], index: 2, kind: output, shape index: {}]
  %s3 = sld [smem:[#allocation0]]
  $region22: #{tpu_custom_call.1} parent=0
    _
  %s5 = ssub.s32 1, %s3
  %s6 = scalar_select 0, %s5, %s3
  $region1: #{tpu_custom_call.1} parent=0
    #allocation2 [shape = 'u8[12288]{0}', space=vmem, size = 0x3000, scoped, tag = 'input window, operand 1, single buffered']
    #allocation3 [shape = 's32[1]{0}', space=sflag, size = 0x4, scoped, tag = 'scoped memory for tpu_custom_call.1']
    #allocation4 [shape = 's32[1]{0}', space=sflag, size = 0x4, scoped, tag = 'scoped memory for tpu_custom_call.1']
    #allocation5 [shape = 'u8[4096]{0}', space=vmem, size = 0x1000, scoped, tag = 'output window, operand 0, single buffered']
    %7 = vsyncpa [#allocation3], 0
    %8 = vsyncpa [#allocation4], 0
    // Predicated region
    $region2: #{tpu_custom_call.1} parent=1 // pred_check
      _
    $region3: #{tpu_custom_call.1} parent=1 // pred_check_branch
      %10 = sbr.rel (0) target = $region5
    $region4: #{tpu_custom_call.1} parent=1 // pred_region
      _
    $region5: #{tpu_custom_call.1} parent=1 // pred_fallthru
      _
    // Predicated region
    $region6: #{tpu_custom_call.1} parent=1 // pred_check
      _
    $region7: #{tpu_custom_call.1} parent=1 // pred_check_branch
      %12 = sbr.rel (0) target = $region9
    $region8: #{tpu_custom_call.1} parent=1 // pred_region
      %s14 = ssub.s32 384, 384
      %15 = vsyncadd [#allocation3], %s14
      %s16 = sshll.u32 [#allocation2], 4
      %s17 = int_to_ptr.vmem [resolvable:$true] %s16
      %22 = dma.hbm_to_vmem [thread:$0]  %s1, 384, %s17, [#allocation3], 128, 128, 8
    $region9: #{tpu_custom_call.1} parent=1 // pred_fallthru
      _
    // Predicated region
    $region10: #{tpu_custom_call.1} parent=1 // pred_check
      _
    $region11: #{tpu_custom_call.1} parent=1 // pred_check_branch
      %24 = sbr.rel (0) target = $region13
    $region12: #{tpu_custom_call.1} parent=1 // pred_region
      %25 = dma.done [#allocation3], 384
    $region13: #{tpu_custom_call.1} parent=1 // pred_fallthru
      _
    %v26 = vld [vmem:[%s0] sm:$0xff]
    %v27 = vld [vmem:[#allocation2] sm:$0xff]
    %v28 = vld [vmem:[#allocation2 + $0x8] sm:$0xff]
    %v29 = vld [vmem:[#allocation2 + $0x10] sm:$0xff]
    %vm30 = vcmask 64512
    %v32 = vsel %vm30, %v29, 0
    %34 = vmatprep.subr.mxu0 0.0
    %35 = vmatpush1.msra.mxu0 %v28
    %36 = vmatprep.subr.mxu0 0.0
    %37 = vmatpush1.msra.mxu0 0.0
    %38 = vmatprep.subr.mxu0 0.0
    %39 = vmatpush1.msra.mxu0 0.0
    %40 = vmatprep.subr.mxu0 0.0
    %41 = vmatpush1.msra.mxu0 0.0
    %42 = vmatprep.subr.mxu0 0.0
    %43 = vmatpush1.msra.mxu0 0.0
    %44 = vmatprep.subr.mxu0 0.0
    %45 = vmatpush1.msra.mxu0 0.0
    %46 = vmatprep.subr.mxu0 0.0
    %47 = vmatpush1.msra.mxu0 0.0
    %48 = vmatprep.subr.mxu0 0.0
    %49 = vmatpush1.msra.mxu0 0.0
    %50 = vmatprep.subr.mxu0 0.0
    %51 = vmatpush1.msra.mxu0 0.0
    %52 = vmatprep.subr.mxu0 0.0
    %53 = vmatpush1.msra.mxu0 0.0
    %54 = vmatprep.subr.mxu0 0.0
    %55 = vmatpush1.msra.mxu0 0.0
    %56 = vmatprep.subr.mxu0 0.0
    %57 = vmatpush1.msra.mxu0 0.0
    %58 = vmatprep.subr.mxu0 0.0
    %59 = vmatpush1.msra.mxu0 0.0
    %60 = vmatprep.subr.mxu0 0.0
    %61 = vmatpush1.msra.mxu0 0.0
    %62 = vmatprep.subr.mxu0 0.0
    %63 = vmatpush1.msra.mxu0 0.0
    %64 = vmatprep.subr.mxu0 0.0
    %65 = vmatpush1.msra.mxu0 0.0
    %66 = vmatprep.subr.mxu0 0.0
    %67 = vmatpush1.msra.mxu0 0.0
    %68 = vmatprep.subr.mxu0 0.0
    %69 = vmatpush1.msra.mxu0 0.0
    %70 = vmatprep.subr.mxu0 0.0
    %71 = vmatpush1.msra.mxu0 0.0
    %72 = vmatprep.subr.mxu0 0.0
    %73 = vmatpush1.msra.mxu0 0.0
    %74 = vmatprep.subr.mxu0 0.0
    %75 = vmatpush1.msra.mxu0 0.0
    %76 = vmatprep.subr.mxu0 0.0
    %77 = vmatpush1.msra.mxu0 0.0
    %78 = vmatprep.subr.mxu0 0.0
    %79 = vmatpush1.msra.mxu0 0.0
    %80 = vmatprep.subr.mxu0 0.0
    %81 = vmatpush1.msra.mxu0 0.0
    %82 = vmatprep.subr.mxu0 0.0
    %83 = vmatpush1.msra.mxu0 0.0
    %84 = vmatprep.subr.mxu0 0.0
    %85 = vmatpush1.msra.mxu0 0.0
    %86 = vmatprep.subr.mxu0 0.0
    %87 = vmatpush1.msra.mxu0 0.0
    %88 = vmatprep.subr.mxu0 0.0
    %89 = vmatpush1.msra.mxu0 0.0
    %90 = vmatprep.subr.mxu0 0.0
    %91 = vmatpush1.msra.mxu0 0.0
    %92 = vmatprep.subr.mxu0 0.0
    %93 = vmatpush1.msra.mxu0 0.0
    %94 = vmatprep.subr.mxu0 0.0
    %95 = vmatpush1.msra.mxu0 0.0
    %96 = vmatprep.subr.mxu0 0.0
    %97 = vmatpush1.msra.mxu0 0.0
    %98 = vmatprep.mubr.f32.mxu0 0.0
    %99 = vmatmul.mubr.f32.gmra.mrb[0].mxu0 %v32
    %v100 = vpop.f32.mrb[0].mxu0
    %v101 = vadd.f32 0.0, %v100
    %v102 = vpop.f32.mrb[0].mxu0
    %103 = vdwg.mxu0
    %v104 = vadd.f32 %v27, %v101
    %106 = vset.pattern.permute.xlu0 0
    %107 = vperm.xlu0 %106, %v26
    %v108 = vpop.permute.xlu0 %107
    %v110 = vmul.f32 %v108, %v104
    %v111 = vsel %vm30, %v110, 0.0
    %v112 = vrot.slane %v111, 4
    %v113 = vadd.f32 %v111, %v112
    %v114 = vrot.slane %v113, 2
    %v115 = vadd.f32 %v113, %v114
    %v116 = vrot.slane %v115, 1
    %v117 = vadd.f32 %v115, %v116
    %118 = vset.pattern.permute.xlu0 1
    %119 = vperm.xlu0 %118, %v26
    %v120 = vpop.permute.xlu0 %119
    %v122 = vmul.f32 %v120, %v28
    %v123 = vsel %vm30, %v122, 0.0
    %v124 = vrot.slane %v123, 4
    %v125 = vadd.f32 %v123, %v124
    %v126 = vrot.slane %v125, 2
    %v127 = vadd.f32 %v125, %v126
    %v128 = vrot.slane %v127, 1
    %v129 = vadd.f32 %v127, %v128
    %v131 = vsel %vm30, %v27, 0
    %133 = vmatprep.subr.mxu0 0.0
    %134 = vmatpush1.msra.mxu0 %v29
    %135 = vmatprep.subr.mxu0 0.0
    %136 = vmatpush1.msra.mxu0 0.0
    %137 = vmatprep.subr.mxu0 0.0
    %138 = vmatpush1.msra.mxu0 0.0
    %139 = vmatprep.subr.mxu0 0.0
    %140 = vmatpush1.msra.mxu0 0.0
    %141 = vmatprep.subr.mxu0 0.0
    %142 = vmatpush1.msra.mxu0 0.0
    %143 = vmatprep.subr.mxu0 0.0
    %144 = vmatpush1.msra.mxu0 0.0
    %145 = vmatprep.subr.mxu0 0.0
    %146 = vmatpush1.msra.mxu0 0.0
    %147 = vmatprep.subr.mxu0 0.0
    %148 = vmatpush1.msra.mxu0 0.0
    %149 = vmatprep.subr.mxu0 0.0
    %150 = vmatpush1.msra.mxu0 0.0
    %151 = vmatprep.subr.mxu0 0.0
    %152 = vmatpush1.msra.mxu0 0.0
    %153 = vmatprep.subr.mxu0 0.0
    %154 = vmatpush1.msra.mxu0 0.0
    %155 = vmatprep.subr.mxu0 0.0
    %156 = vmatpush1.msra.mxu0 0.0
    %157 = vmatprep.subr.mxu0 0.0
    %158 = vmatpush1.msra.mxu0 0.0
    %159 = vmatprep.subr.mxu0 0.0
    %160 = vmatpush1.msra.mxu0 0.0
    %161 = vmatprep.subr.mxu0 0.0
    %162 = vmatpush1.msra.mxu0 0.0
    %163 = vmatprep.subr.mxu0 0.0
    %164 = vmatpush1.msra.mxu0 0.0
    %165 = vmatprep.subr.mxu0 0.0
    %166 = vmatpush1.msra.mxu0 0.0
    %167 = vmatprep.subr.mxu0 0.0
    %168 = vmatpush1.msra.mxu0 0.0
    %169 = vmatprep.subr.mxu0 0.0
    %170 = vmatpush1.msra.mxu0 0.0
    %171 = vmatprep.subr.mxu0 0.0
    %172 = vmatpush1.msra.mxu0 0.0
    %173 = vmatprep.subr.mxu0 0.0
    %174 = vmatpush1.msra.mxu0 0.0
    %175 = vmatprep.subr.mxu0 0.0
    %176 = vmatpush1.msra.mxu0 0.0
    %177 = vmatprep.subr.mxu0 0.0
    %178 = vmatpush1.msra.mxu0 0.0
    %179 = vmatprep.subr.mxu0 0.0
    %180 = vmatpush1.msra.mxu0 0.0
    %181 = vmatprep.subr.mxu0 0.0
    %182 = vmatpush1.msra.mxu0 0.0
    %183 = vmatprep.subr.mxu0 0.0
    %184 = vmatpush1.msra.mxu0 0.0
    %185 = vmatprep.subr.mxu0 0.0
    %186 = vmatpush1.msra.mxu0 0.0
    %187 = vmatprep.subr.mxu0 0.0
    %188 = vmatpush1.msra.mxu0 0.0
    %189 = vmatprep.subr.mxu0 0.0
    %190 = vmatpush1.msra.mxu0 0.0
    %191 = vmatprep.subr.mxu0 0.0
    %192 = vmatpush1.msra.mxu0 0.0
    %193 = vmatprep.subr.mxu0 0.0
    %194 = vmatpush1.msra.mxu0 0.0
    %195 = vmatprep.subr.mxu0 0.0
    %196 = vmatpush1.msra.mxu0 0.0
    %197 = vmatprep.mubr.f32.mxu0 0.0
    %198 = vmatmul.mubr.f32.gmra.mrb[0].mxu0 %v131
    %v199 = vpop.f32.mrb[0].mxu0
    %v200 = vadd.f32 %v117, %v199
    %v201 = vpop.f32.mrb[0].mxu0
    %202 = vdwg.mxu0
    %v203 = vadd.f32 %v200, %v129
    %204 = vst.msk [vmem:[#allocation5] sm:$0xff] %vm30, %v203
    // Predicated region
    $region14: #{tpu_custom_call.1} parent=1 // pred_check
      _
    $region15: #{tpu_custom_call.1} parent=1 // pred_check_branch
      %206 = sbr.rel (0) target = $region17
    $region16: #{tpu_custom_call.1} parent=1 // pred_region
      %s208 = ssub.s32 128, 128
      %209 = vsyncadd [#allocation4], %s208
      %s211 = sshll.u32 [#allocation5], 4
      %s212 = int_to_ptr.vmem [resolvable:$true] %s211
      %214 = dma.vmem_to_hbm [thread:$0]  %s212, 128, %s2, [#allocation4]
    $region17: #{tpu_custom_call.1} parent=1 // pred_fallthru
      _
    // Predicated region
    $region18: #{tpu_custom_call.1} parent=1 // pred_check
      _
    $region19: #{tpu_custom_call.1} parent=1 // pred_check_branch
      %216 = sbr.rel (0) target = $region21
    $region20: #{tpu_custom_call.1} parent=1 // pred_region
      %217 = dma.done [#allocation4], 128
    $region21: #{tpu_custom_call.1} parent=1 // pred_fallthru
      _
    %218 = vsyncpa [#allocation3], 1
    %219 = vsyncpa [#allocation4], 1

</llo_original>
